<compile_context>
chip_gen: v7x
topology: tpu7x:2x2x1
jax: 0.10.0
libtpu: 0.0.40
codegen_flags: <defaults>
</compile_context>

<pallas_src>
import jax
import jax.numpy as jnp
from jax.experimental import pallas as pl
from jax.experimental.pallas import tpu as pltpu

EPS = 1e-3


def _bn_train_kernel(x_ref, gb_ref, o_ref, stats_ref):
    """One channel slab.  x_ref is (tc, hw) when N==1, else (n, tc, hw).
    gb_ref is (tc, 2) packed [gamma, beta]; stats_ref is (tc, 2) [mean, var]."""
    x = x_ref[...].astype(jnp.float32)

    if x.ndim == 2:                                   # N == 1 (squeezed path)
        inv_count = 1.0 / float(x.shape[1])
        mean = jnp.sum(x, axis=1, keepdims=True) * inv_count          # (tc, 1)
        diff = x - mean
        var = jnp.sum(diff * diff, axis=1, keepdims=True) * inv_count
    else:                                             # (n, tc, hw)
        n, _, hw = x.shape
        inv_count = 1.0 / float(n * hw)
        s = jnp.sum(x, axis=2, keepdims=True)                         # (n, tc, 1)
        mean = jnp.sum(s, axis=0) * inv_count                         # (tc, 1)
        diff = x - mean
        v = jnp.sum(diff * diff, axis=2, keepdims=True)
        var = jnp.sum(v, axis=0) * inv_count                          # (tc, 1)

    inv_std = jax.lax.rsqrt(var + EPS)                                # EUP

    gamma = gb_ref[:, 0:1]                                            # (tc, 1)
    beta = gb_ref[:, 1:2]                                             # (tc, 1)
    scale = gamma * inv_std
    shift = beta - mean * scale

    o_ref[...] = (x * scale + shift).astype(o_ref.dtype)
    stats_ref[:, 0:1] = mean
    stats_ref[:, 1:2] = var


def _pick_channel_tile(n, c, hw, itemsize, target_block_bytes=6 << 20):
    """VMEM-aware channel-tile picker.

    Blocks target ~6 MiB (4x that for the double-buffered in+out working set
    stays <= ~24-28 MiB, safe for v7x's 32 MiB scoped / 64 MiB physical VMEM).
    Prefers an even number of grid steps (v7x 2-core balance) and >= 4 steps
    for larger layers (>= 2 per core so DMA overlaps compute); tiny layers
    collapse to 2 steps (one block per v7x core)."""
    if c % 8 != 0:
        return c
    divs = [d for d in range(8, c + 1, 8) if c % d == 0]
    if not divs:
        return c
    fitting = [d for d in divs if n * d * hw * itemsize <= target_block_bytes]
    if not fitting:
        # TODO(synk): for very large N*H*W even an 8-channel slab exceeds the
        # budget; that needs a second (HW) grid axis with an accumulator pass.
        # Not reachable for this module's shapes.
        return divs[0]
    total_bytes = n * c * hw * itemsize
    if total_bytes <= 2 * target_block_bytes:
        # Tiny layer (the real 14x14 case): per-step overhead (~0.35us)
        # dominates, so use exactly 2 blocks if possible, else one.
        two_step = [d for d in fitting if c // d == 2]
        return two_step[0] if two_step else fitting[-1]
    best = [d for d in fitting if (c // d) % 2 == 0 and (c // d) >= 4]
    if not best:
        best = [d for d in fitting if (c // d) % 2 == 0] or fitting
    return max(best)


def batchnorm2d_train(x_nchw, gamma, beta, running_mean=None, running_var=None,
                      momentum=0.01):
    """Training-mode BatchNorm2d forward.  Preserves the input dtype.

    Returns the normalized output; if running_mean/running_var are given, also
    returns their functionally-updated values (PyTorch semantics: running_var
    is updated with the *unbiased* batch variance)."""
    n, c, h, w = x_nchw.shape
    hw = h * w
    x_dtype = x_nchw.dtype
    itemsize = x_nchw.dtype.itemsize

    tc = _pick_channel_tile(n, c, hw, itemsize)
    grid = (c // tc,)

    # gamma/beta packed into one (C, 2) array -> one small DMA per grid step.
    gb = jnp.stack([gamma.astype(jnp.float32), beta.astype(jnp.float32)],
                   axis=1)                                            # (C, 2)

    if n == 1:
        # Squeeze the degenerate batch axis: kernel sees 2-D (tc, hw) blocks.
        x_in = x_nchw.reshape(c, hw)
        x_spec = pl.BlockSpec((tc, hw), lambda j: (j, 0))
        o_spec = pl.BlockSpec((tc, hw), lambda j: (j, 0))
        out_struct = jax.ShapeDtypeStruct((c, hw), x_dtype)
        block_bytes = tc * hw * itemsize
    else:
        x_in = x_nchw.reshape(n, c, hw)
        x_spec = pl.BlockSpec((n, tc, hw), lambda j: (0, j, 0))
        o_spec = pl.BlockSpec((n, tc, hw), lambda j: (0, j, 0))
        out_struct = jax.ShapeDtypeStruct((n, c, hw), x_dtype)
        block_bytes = n * tc * hw * itemsize

    gb_spec = pl.BlockSpec((tc, 2), lambda j: (j, 0))
    stats_spec = pl.BlockSpec((tc, 2), lambda j: (j, 0))
    stats_struct = jax.ShapeDtypeStruct((c, 2), jnp.float32)

    # 2 buffers each for x-in and x-out, plus lane-padded (tc, 128) param and
    # stat buffers.  Set the scoped-VMEM limit explicitly only when the
    # estimate exceeds v5e's 16 MiB default.
    vmem_needed = 4 * block_bytes + 4 * (tc * 128 * 4) + (2 << 20)
    cp_kwargs = dict(dimension_semantics=("parallel",))
    if vmem_needed > (16 << 20):
        cp_kwargs["vmem_limit_bytes"] = int(min(vmem_needed, 48 << 20))

    out, stats = pl.pallas_call(
        _bn_train_kernel,
        out_shape=(out_struct, stats_struct),
        grid=grid,
        in_specs=[x_spec, gb_spec],
        out_specs=(o_spec, stats_spec),
        compiler_params=pltpu.CompilerParams(**cp_kwargs),
    )(x_in, gb)

    out = out.reshape(n, c, h, w)

    if running_mean is None or running_var is None:
        return out

    batch_mean = stats[:, 0]
    batch_var = stats[:, 1]                      # biased (used for normalize)
    count = n * hw
    unbiased_var = batch_var * (float(count) / float(max(count - 1, 1)))
    new_rm = (1.0 - momentum) * running_mean + momentum * batch_mean
    new_rv = (1.0 - momentum) * running_var + momentum * unbiased_var
    return out, new_rm, new_rv


def _reference_bn(x, gamma, beta):
    c = x.shape[1]
    mean = jnp.mean(x, axis=(0, 2, 3), keepdims=True)
    var = jnp.mean((x - mean) ** 2, axis=(0, 2, 3), keepdims=True)
    return (x - mean) * jax.lax.rsqrt(var + EPS) * gamma.reshape(1, c, 1, 1) \
        + beta.reshape(1, c, 1, 1)


if __name__ == "__main__":
    key = jax.random.PRNGKey(0)
    kx, kg, kb, kx2, kg2, kb2 = jax.random.split(key, 6)

    # Small-shape sanity check (exercises the batched 3-D path, grid=2).
    N, C, H, W = 2, 32, 14, 14
    x = jax.random.normal(kx, (N, C, H, W), dtype=jnp.float32)
    gamma = 1.0 + 0.1 * jax.random.normal(kg, (C,), dtype=jnp.float32)
    beta = 0.1 * jax.random.normal(kb, (C,), dtype=jnp.float32)
    out = jax.block_until_ready(batchnorm2d_train(x, gamma, beta))
    ref = _reference_bn(x, gamma, beta)
    assert out.shape == (N, C, H, W)
    assert out.dtype == x.dtype
    assert jnp.max(jnp.abs(out - ref)) < 1e-4

    # The module's exact shape (1, 960, 14, 14): squeezed 2-D path, tc=480,
    # grid=2 (one channel slab per v7x TensorCore).  Also exercises the
    # functional running-stats update.
    N2, C2 = 1, 960
    x2 = jax.random.normal(kx2, (N2, C2, H, W), dtype=jnp.float32)
    gamma2 = 1.0 + 0.1 * jax.random.normal(kg2, (C2,), dtype=jnp.float32)
    beta2 = 0.1 * jax.random.normal(kb2, (C2,), dtype=jnp.float32)
    rm0 = jnp.zeros((C2,), jnp.float32)
    rv0 = jnp.ones((C2,), jnp.float32)
    out2, new_rm, new_rv = batchnorm2d_train(x2, gamma2, beta2, rm0, rv0,
                                             momentum=0.01)
    out2 = jax.block_until_ready(out2)
    ref2 = _reference_bn(x2, gamma2, beta2)
    assert out2.shape == (N2, C2, H, W)
    assert jnp.max(jnp.abs(out2 - ref2)) < 1e-4
    bmean = jnp.mean(x2, axis=(0, 2, 3))
    bvar_unbiased = jnp.var(x2, axis=(0, 2, 3), ddof=1)
    assert jnp.max(jnp.abs(new_rm - 0.01 * bmean)) < 1e-5
    assert jnp.max(jnp.abs(new_rv - (0.99 + 0.01 * bvar_unbiased))) < 1e-4

    # bf16 activations: input dtype is preserved, stats stay in f32.
    x3 = x2.astype(jnp.bfloat16)
    out3 = jax.block_until_ready(batchnorm2d_train(x3, gamma2, beta2))
    assert out3.dtype == jnp.bfloat16
    ref3 = _reference_bn(x3.astype(jnp.float32), gamma2, beta2)
    assert jnp.max(jnp.abs(out3.astype(jnp.float32) - ref3)) < 5e-2

    print("KERNEL_OK")
</pallas_src>

<mosaic_0001>
module attributes {stable_mosaic.version = 11 : i64} {
  func.func @_bn_train_kernel(%arg0: i32, %arg1: memref<2x16x196xf32, #tpu.memory_space<vmem>>, %arg2: memref<16x2xf32, #tpu.memory_space<vmem>>, %arg3: memref<2x16x196xf32, #tpu.memory_space<vmem>>, %arg4: memref<16x2xf32, #tpu.memory_space<vmem>>) attributes {dimension_semantics = [#tpu.dimension_semantics<parallel>], iteration_bounds = array<i64: 2>, scalar_prefetch = 0 : i64, scratch_operands = 0 : i64, tpu.core_type = #tpu.core_type<tc>, window_params = [{transform_indices = @transform_0, window_bounds = array<i64: 2, 16, 196>}, {transform_indices = @transform_1, window_bounds = array<i64: 16, 2>}, {transform_indices = @transform_2, window_bounds = array<i64: 2, 16, 196>}, {transform_indices = @transform_3, window_bounds = array<i64: 16, 2>}]} {
    %c0 = arith.constant 0 : index
    %c0_0 = arith.constant 0 : index
    %c0_1 = arith.constant 0 : index
    %0 = vector.load %arg1[%c0, %c0_0, %c0_1] : memref<2x16x196xf32, #tpu.memory_space<vmem>>, vector<2x16x196xf32>
    %cst = arith.constant dense<0.000000e+00> : vector<2x16xf32>
    %1 = vector.multi_reduction <add>, %0, %cst [2] : vector<2x16x196xf32> to vector<2x16xf32>
    %2 = vector.shape_cast %1 : vector<2x16xf32> to vector<2x16x1xf32>
    %cst_2 = arith.constant dense<0.000000e+00> : vector<16x1xf32>
    %3 = vector.multi_reduction <add>, %2, %cst_2 [0] : vector<2x16x1xf32> to vector<16x1xf32>
    %cst_3 = arith.constant 0.00255102036 : f32
    %4 = vector.broadcast %cst_3 : f32 to vector<16x1xf32>
    %5 = arith.mulf %3, %4 : vector<16x1xf32>
    %6 = vector.shape_cast %5 : vector<16x1xf32> to vector<1x16x1xf32>
    %7 = vector.broadcast %6 : vector<1x16x1xf32> to vector<2x16x196xf32>
    %8 = arith.subf %0, %7 : vector<2x16x196xf32>
    %9 = arith.mulf %8, %8 : vector<2x16x196xf32>
    %cst_4 = arith.constant dense<0.000000e+00> : vector<2x16xf32>
    %10 = vector.multi_reduction <add>, %9, %cst_4 [2] : vector<2x16x196xf32> to vector<2x16xf32>
    %11 = vector.shape_cast %10 : vector<2x16xf32> to vector<2x16x1xf32>
    %cst_5 = arith.constant dense<0.000000e+00> : vector<16x1xf32>
    %12 = vector.multi_reduction <add>, %11, %cst_5 [0] : vector<2x16x1xf32> to vector<16x1xf32>
    %cst_6 = arith.constant 0.00255102036 : f32
    %13 = vector.broadcast %cst_6 : f32 to vector<16x1xf32>
    %14 = arith.mulf %12, %13 : vector<16x1xf32>
    %cst_7 = arith.constant 1.000000e-03 : f32
    %15 = vector.broadcast %cst_7 : f32 to vector<16x1xf32>
    %16 = arith.addf %14, %15 : vector<16x1xf32>
    %17 = math.rsqrt %16 : vector<16x1xf32>
    %c0_8 = arith.constant 0 : index
    %c0_9 = arith.constant 0 : index
    %18 = vector.load %arg2[%c0_8, %c0_9] : memref<16x2xf32, #tpu.memory_space<vmem>>, vector<16x1xf32>
    %c0_10 = arith.constant 0 : index
    %c1 = arith.constant 1 : index
    %19 = vector.load %arg2[%c0_10, %c1] : memref<16x2xf32, #tpu.memory_space<vmem>>, vector<16x1xf32>
    %20 = arith.mulf %18, %17 : vector<16x1xf32>
    %21 = arith.mulf %5, %20 : vector<16x1xf32>
    %22 = arith.subf %19, %21 : vector<16x1xf32>
    %23 = vector.shape_cast %20 : vector<16x1xf32> to vector<1x16x1xf32>
    %24 = vector.broadcast %23 : vector<1x16x1xf32> to vector<2x16x196xf32>
    %25 = arith.mulf %0, %24 : vector<2x16x196xf32>
    %26 = vector.shape_cast %22 : vector<16x1xf32> to vector<1x16x1xf32>
    %27 = vector.broadcast %26 : vector<1x16x1xf32> to vector<2x16x196xf32>
    %28 = arith.addf %25, %27 : vector<2x16x196xf32>
    %c0_11 = arith.constant 0 : index
    %c0_12 = arith.constant 0 : index
    %c0_13 = arith.constant 0 : index
    %29 = vector.load %arg3[%c0_11, %c0_12, %c0_13] : memref<2x16x196xf32, #tpu.memory_space<vmem>>, vector<2x16x196xf32>
    tpu.vector_store %arg3[%c0_11, %c0_12, %c0_13], %28 {strides = array<i32>} : memref<2x16x196xf32, #tpu.memory_space<vmem>>, vector<2x16x196xf32>,
    %c0_14 = arith.constant 0 : index
    %c0_15 = arith.constant 0 : index
    %30 = vector.load %arg4[%c0_14, %c0_15] : memref<16x2xf32, #tpu.memory_space<vmem>>, vector<16x1xf32>
    tpu.vector_store %arg4[%c0_14, %c0_15], %5 {strides = array<i32>} : memref<16x2xf32, #tpu.memory_space<vmem>>, vector<16x1xf32>,
    %c0_16 = arith.constant 0 : index
    %c1_17 = arith.constant 1 : index
    %31 = vector.load %arg4[%c0_16, %c1_17] : memref<16x2xf32, #tpu.memory_space<vmem>>, vector<16x1xf32>
    tpu.vector_store %arg4[%c0_16, %c1_17], %14 {strides = array<i32>} : memref<16x2xf32, #tpu.memory_space<vmem>>, vector<16x1xf32>,
    return
  }
  func.func @transform_0(%arg0: i32) -> (i32, i32, i32) {
    %c0_i32 = arith.constant 0 : i32
    %c0_i32_0 = arith.constant 0 : i32
    %c0_i32_1 = arith.constant 0 : i32
    return %c0_i32, %arg0, %c0_i32_0 : i32, i32, i32
  }
  func.func @transform_1(%arg0: i32) -> (i32, i32) {
    %c0_i32 = arith.constant 0 : i32
    %c0_i32_0 = arith.constant 0 : i32
    return %arg0, %c0_i32 : i32, i32
  }
  func.func @transform_2(%arg0: i32) -> (i32, i32, i32) {
    %c0_i32 = arith.constant 0 : i32
    %c0_i32_0 = arith.constant 0 : i32
    %c0_i32_1 = arith.constant 0 : i32
    return %c0_i32, %arg0, %c0_i32_0 : i32, i32, i32
  }
  func.func @transform_3(%arg0: i32) -> (i32, i32) {
    %c0_i32 = arith.constant 0 : i32
    %c0_i32_0 = arith.constant 0 : i32
    return %arg0, %c0_i32 : i32, i32
  }
}

</mosaic_0001>

<llo_original>
// kernel: tpu_custom_call.1
$region0: #{tpu_custom_call.1}
  #allocation0 [shape = 'u32[]', space=smem, size = 0x4, offset = 0x4, fixed_abs, tag = 'smem constant byte address 0x4 - core index']
  #allocation1 [shape = 'u32[144,128]{1,0:T(1,128)}', space=vmem, size = 0x12000, scoped, tag = 'internal scratch']
  #allocation6 [shape = 's32[]', space=sflag, size = 0x4, offset = 0, fixed_abs, tag = 'sflag constant byte address 0x0 - dummy sync flag']
  #allocation8 [shape = 's32[]', space=sflag, size = 0x4, offset = 0, fixed_abs, tag = 'sflag constant byte address 0x0 - dummy sync flag']
  %s0 = inlined_call_operand.hbm [shape: f32[2,32,196], index: 0, kind: input, shape index: {}]
  %s1 = inlined_call_operand.vmem [shape: f32[32,2], index: 1, kind: input, shape index: {}]
  %s2 = inlined_call_operand.hbm [shape: f32[2,32,196], index: 2, kind: output, shape index: {0}]
  %s3 = inlined_call_operand.vmem [shape: f32[32,2], index: 3, kind: output, shape index: {1}]
  %4 = xla_tuple %s2, %s3
  %s5 = sld [smem:[#allocation0]]
  $region53: #{tpu_custom_call.1} parent=0
    _
  %s7 = ssub.s32 1, %s5
  %s8 = scalar_select 0, %s7, %s5
  $region1: #{tpu_custom_call.1} parent=0
    #allocation2 [shape = 'u8[65536]{0}', space=vmem, size = 0x10000, scoped, tag = 'input window, operand 0']
    #allocation3 [shape = 's32[2]{0}', space=sflag, size = 0x8, scoped, tag = 'scoped memory for tpu_custom_call.1']
    #allocation4 [shape = 's32[2]{0}', space=sflag, size = 0x8, scoped, tag = 'scoped memory for tpu_custom_call.1']
    #allocation5 [shape = 'u8[65536]{0}', space=vmem, size = 0x10000, scoped, tag = 'output window, operand 0']
    %9 = vsyncpa [#allocation3], 0
    %s10 = scalar_lea.sflag [#allocation3], 1
    %11 = vsyncpa %s10, 0
    %12 = vsyncpa [#allocation4], 0
    %s13 = scalar_lea.sflag [#allocation4], 1
    %14 = vsyncpa %s13, 0
    loop: start=0, step=1, limit=4
    $region2: #{tpu_custom_call.1} parent=1 // loop_pre_header
      _
    $region3: #{tpu_custom_call.1} parent=1 // loop_header
      %s16 = sphi 0, %s20
      %p17 = scmp.ge.s32.totalorder %s16, 4
      %s26 = sphi 0, %s28
      %s29 = sphi 0, %s26
      %s30 = sphi 0, %s29
      %s46 = sphi 0, %s30
      %s52 = sphi 0, %s54
      %s55 = sphi 0, %s52
      %s56 = sphi 0, %s55
      %s72 = sphi 0, %s56
      %s78 = sphi 0, %s80
      %s81 = sphi 0, %s78
      %s82 = sphi 0, %s81
      %s98 = sphi 0, %s82
      %s104 = sphi 0, %s106
      %s107 = sphi 0, %s104
      %s108 = sphi 0, %s107
      %s124 = sphi 0, %s108
    $region4: #{tpu_custom_call.1} parent=1 // loop_header_branch
      %19 = sbr.rel (%p17) target = $region8
    $region5: #{tpu_custom_call.1} parent=1 // loop_body
      %s21 = ssub.s32 %s16, 1
      %s22 = ssub.s32 %s16, 2
      %s23 = sadd.s32 %s16, 1
      %s24 = ssub.s32 %s16, %s23
      %p25 = scmp.eq.s32.totalorder %s24, 0
      %s27 = sadd.s32 %s26, 1
      %s28 = scalar_select %p25, %s26, %s27
      %p31 = pneg %p25
      %p32 = scmp.eq.s32.totalorder %s16, 1
      %p33 = por %p31, %p32
      %p34 = scmp.ne.s32.totalorder %s26, %s29
      %p35 = scmp.eq.s32.totalorder %s16, 0
      %p36 = por %p34, %p35
      %p37 = scmp.ne.s32.totalorder %s26, %s29
      %p38 = scmp.eq.s32.totalorder %s21, 1
      %p39 = por %p37, %p38
      %p40 = scmp.ne.s32.totalorder %s29, %s30
      %p41 = scmp.eq.s32.totalorder %s21, 0
      %p42 = por %p40, %p41
      %p43 = scmp.ne.s32.totalorder %s29, %s30
      %p44 = scmp.eq.s32.totalorder %s22, 1
      %p45 = por %p43, %p44
      %p47 = scmp.ne.s32.totalorder %s30, %s46
      %p48 = scmp.eq.s32.totalorder %s22, 0
      %p49 = por %p47, %p48
      %s50 = ssub.s32 %s16, %s23
      %p51 = scmp.eq.s32.totalorder %s50, 0
      %s53 = sadd.s32 %s52, 1
      %s54 = scalar_select %p51, %s52, %s53
      %p57 = pneg %p51
      %p58 = scmp.eq.s32.totalorder %s16, 1
      %p59 = por %p57, %p58
      %p60 = scmp.ne.s32.totalorder %s52, %s55
      %p61 = scmp.eq.s32.totalorder %s16, 0
      %p62 = por %p60, %p61
      %p63 = scmp.ne.s32.totalorder %s52, %s55
      %p64 = scmp.eq.s32.totalorder %s21, 1
      %p65 = por %p63, %p64
      %p66 = scmp.ne.s32.totalorder %s55, %s56
      %p67 = scmp.eq.s32.totalorder %s21, 0
      %p68 = por %p66, %p67
      %p69 = scmp.ne.s32.totalorder %s55, %s56
      %p70 = scmp.eq.s32.totalorder %s22, 1
      %p71 = por %p69, %p70
      %p73 = scmp.ne.s32.totalorder %s56, %s72
      %p74 = scmp.eq.s32.totalorder %s22, 0
      %p75 = por %p73, %p74
      %s76 = ssub.s32 %s16, %s23
      %p77 = scmp.eq.s32.totalorder %s76, 0
      %s79 = sadd.s32 %s78, 1
      %s80 = scalar_select %p77, %s78, %s79
      %p83 = pneg %p77
      %p84 = scmp.eq.s32.totalorder %s16, 1
      %p85 = por %p83, %p84
      %p86 = scmp.ne.s32.totalorder %s78, %s81
      %p87 = scmp.eq.s32.totalorder %s16, 0
      %p88 = por %p86, %p87
      %p89 = scmp.ne.s32.totalorder %s78, %s81
      %p90 = scmp.eq.s32.totalorder %s21, 1
      %p91 = por %p89, %p90
      %p92 = scmp.ne.s32.totalorder %s81, %s82
      %p93 = scmp.eq.s32.totalorder %s21, 0
      %p94 = por %p92, %p93
      %p95 = scmp.ne.s32.totalorder %s81, %s82
      %p96 = scmp.eq.s32.totalorder %s22, 1
      %p97 = por %p95, %p96
      %p99 = scmp.ne.s32.totalorder %s82, %s98
      %p100 = scmp.eq.s32.totalorder %s22, 0
      %p101 = por %p99, %p100
      %s102 = ssub.s32 %s16, %s23
      %p103 = scmp.eq.s32.totalorder %s102, 0
      %s105 = sadd.s32 %s104, 1
      %s106 = scalar_select %p103, %s104, %s105
      %p109 = pneg %p103
      %p110 = scmp.eq.s32.totalorder %s16, 1
      %p111 = por %p109, %p110
      %p112 = scmp.ne.s32.totalorder %s104, %s107
      %p113 = scmp.eq.s32.totalorder %s16, 0
      %p114 = por %p112, %p113
      %p115 = scmp.ne.s32.totalorder %s104, %s107
      %p116 = scmp.eq.s32.totalorder %s21, 1
      %p117 = por %p115, %p116
      %p118 = scmp.ne.s32.totalorder %s107, %s108
      %p119 = scmp.eq.s32.totalorder %s21, 0
      %p120 = por %p118, %p119
      %p121 = scmp.ne.s32.totalorder %s107, %s108
      %p122 = scmp.eq.s32.totalorder %s22, 1
      %p123 = por %p121, %p122
      %p125 = scmp.ne.s32.totalorder %s108, %s124
      %p126 = scmp.eq.s32.totalorder %s22, 0
      %p127 = por %p125, %p126
      %p128 = scmp.le.s32.totalorder 1, %s16
      %p129 = scmp.lt.s32.totalorder %s16, 3
      %p130 = pnand %p128, %p129
      %p131 = pneg %p130
      // Predicated region
      $region9: #{tpu_custom_call.1} parent=5 // pred_check
        _
      $region10: #{tpu_custom_call.1} parent=5 // pred_check_branch
        %133 = sbr.rel (%p130) target = $region12
      $region11: #{tpu_custom_call.1} parent=5 // pred_region
        %s134 = ssub.s32 %s16, 1
      $region12: #{tpu_custom_call.1} parent=5 // pred_fallthru
        _
      %p135 = scmp.lt.s32.totalorder %s16, 2
      // Predicated region
      $region13: #{tpu_custom_call.1} parent=5 // pred_check
        %p136 = pneg %p135
      $region14: #{tpu_custom_call.1} parent=5 // pred_check_branch
        %138 = sbr.rel (%p136) target = $region16
      $region15: #{tpu_custom_call.1} parent=5 // pred_region
        // Predicated region
        $region17: #{tpu_custom_call.1} parent=15 // pred_check
          %p139 = pneg %p36
        $region18: #{tpu_custom_call.1} parent=15 // pred_check_branch
          %141 = sbr.rel (%p139) target = $region20
        $region19: #{tpu_custom_call.1} parent=15 // pred_region
          #allocation7 [shape = 'u32[6]{0}', space=smem, size = 0x18, scoped, tag = 'DMA stride descriptor']
          %s142 = sand.u32 %s26, 1
          %s143 = scalar_lea.sflag [#allocation3], %s142
          %s144 = sand.u32 %s26, 1
          %s145 = smul.addr %s144, 64
          %s146 = scalar_lea.vmem [#allocation2], %s145
          %s147 = smul.u32 2, %s16
          %s149 = ssub.s32 1024, 1024
          %150 = vsyncadd %s143, %s149
          %s151 = smul.addr %s147, 2
          %s152 = smul.addr %s151, 128
          %s153 = scalar_lea.hbm %s0, %s152
          %s155 = sshll.u32 1, 14
          %s156 = sxor.u32 4294967295, %s155
          %s158 = sld [smem:[#allocation0]]
          %s159 = sadd.s32 2, %s158
          %s161 = sshll.u32 7, 26
          %s162 = sxor.u32 4294967295, %s161
          %s163 = sand.u32 0, %s162
          %s164 = sshll.u32 %s159, 26
          %s165 = sor.u32 %s163, %s164
          %s166 = sshll.u32 %s146, 4
          %s167 = int_to_ptr.vmem [resolvable:$true] %s166
          %173 = sst [smem:[#allocation7]] 1024
          %s174 = scalar_lea.smem [#allocation7], 1
          %175 = sst [smem:[%s174]] 512
          %s176 = scalar_lea.smem [#allocation7], 2
          %177 = sst [smem:[%s176]] 2
          %s178 = scalar_lea.smem [#allocation7], 3
          %179 = sst [smem:[%s178]] 256
          %s180 = scalar_lea.smem [#allocation7], 4
          %181 = sst [smem:[%s180]] 256
          %s182 = scalar_lea.smem [#allocation7], 5
          %183 = sst [smem:[%s182]] 16
          %185 = dma.general %s153, 1024, %s167, %s143, [#allocation6], [#allocation7], %s165, 0
        $region20: #{tpu_custom_call.1} parent=15 // pred_fallthru
          _
        // Predicated region
        $region21: #{tpu_custom_call.1} parent=15 // pred_check
          %p186 = pneg %p62
        $region22: #{tpu_custom_call.1} parent=15 // pred_check_branch
          %188 = sbr.rel (%p186) target = $region24
        $region23: #{tpu_custom_call.1} parent=15 // pred_region
          %s189 = smul.u32 2, %s16
          %p190 = scmp.lt.s32.totalorder %s189, 3
          %s191 = scalar_select %p190, %s189, 3
          %s192 = smul.addr %s191, 8
          %s193 = scalar_lea.vmem %s1, %s192
          %s194 = smul.u32 2, %s16
        $region24: #{tpu_custom_call.1} parent=15 // pred_fallthru
          _
      $region16: #{tpu_custom_call.1} parent=5 // pred_fallthru
        _
      %p195 = scmp.le.s32.totalorder 1, %s16
      %p196 = scmp.lt.s32.totalorder %s16, 3
      %p197 = pnand %p195, %p196
      %p198 = pneg %p197
      // Predicated region
      $region25: #{tpu_custom_call.1} parent=5 // pred_check
        _
      $region26: #{tpu_custom_call.1} parent=5 // pred_check_branch
        %200 = sbr.rel (%p197) target = $region28
      $region27: #{tpu_custom_call.1} parent=5 // pred_region
        %s201 = ssub.s32 %s16, 1
        %s202 = sand.u32 %s29, 1
        %s203 = scalar_lea.sflag [#allocation3], %s202
        %s204 = sand.u32 %s29, 1
        %s205 = smul.addr %s204, 64
        %s206 = scalar_lea.vmem [#allocation2], %s205
        // Predicated region
        $region29: #{tpu_custom_call.1} parent=27 // pred_check
          %p207 = pneg %p42
        $region30: #{tpu_custom_call.1} parent=27 // pred_check_branch
          %209 = sbr.rel (%p207) target = $region32
        $region31: #{tpu_custom_call.1} parent=27 // pred_region
          %210 = dma.done %s203, 1024
        $region32: #{tpu_custom_call.1} parent=27 // pred_fallthru
          _
        %s211 = sand.u32 %s29, 1
        %s212 = scalar_lea.sflag [#allocation3], %s211
        %s213 = sand.u32 %s29, 1
        %s214 = smul.addr %s213, 64
        %s215 = scalar_lea.vmem [#allocation2], %s214
        %p216 = pneg %p42
        %p217 = pneg %p39
        %s218 = smul.u32 2, %s21
        %p219 = scmp.lt.s32.totalorder %s218, 3
        %s220 = scalar_select %p219, %s218, 3
        %s221 = smul.addr %s220, 8
        %s222 = scalar_lea.vmem %s1, %s221
        %p223 = pneg %p68
        %p224 = pneg %p65
        %p225 = pneg %p94
        %p226 = pneg %p91
        %s227 = sand.u32 %s81, 1
        %s228 = scalar_lea.sflag [#allocation4], %s227
        %s229 = sand.u32 %s81, 1
        %s230 = smul.addr %s229, 64
        %s231 = scalar_lea.vmem [#allocation5], %s230
        %p232 = pneg %p120
        %p233 = pneg %p117
        %s234 = smul.u32 2, %s21
        %p235 = scmp.lt.s32.totalorder %s234, 3
        %s236 = scalar_select %p235, %s234, 3
        %s237 = smul.addr %s236, 8
        %s238 = scalar_lea.vmem %s3, %s237
        %s239 = smul.u32 2, %s21
        %s240 = smul.u32 2, %s21
        %p241 = scmp.lt.s32.totalorder %s240, 3
        %s242 = scalar_select %p241, %s240, 3
        %s243 = smul.addr %s242, 8
        %s244 = scalar_lea.vmem %s1, %s243
        %s245 = smul.u32 2, %s21
        %s246 = smul.u32 2, %s21
        %s247 = smul.u32 2, %s21
        %p248 = scmp.lt.s32.totalorder %s247, 3
        %s249 = scalar_select %p248, %s247, 3
        %s250 = smul.addr %s249, 8
        %s251 = scalar_lea.vmem %s3, %s250
        %s252 = smul.u32 2, %s21
        %v253 = vld [vmem:[%s206] sm:$0xff]
        %v254 = vld [vmem:[%s206 + $0x8] sm:$0xff]
        %v255 = vld [vmem:[%s206 + $0x10] sm:$0xff]
        %v256 = vld [vmem:[%s206 + $0x18] sm:$0xff]
        %v257 = vld [vmem:[%s206 + $0x20] sm:$0xff]
        %v258 = vld [vmem:[%s206 + $0x28] sm:$0xff]
        %v259 = vld [vmem:[%s206 + $0x30] sm:$0xff]
        %v260 = vld [vmem:[%s206 + $0x38] sm:$0xff]
        %vm261 = vcmask 556032
        %v262 = vsel %vm261, %v254, 0.0
        %v263 = vadd.f32 %v253, %v262
        %264 = vadd.xlane.f32.xlu0 %v263
        %v265 = vpop.xlane.xlu0 %264
        %v266 = vsel %vm261, %v256, 0.0
        %v267 = vadd.f32 %v255, %v266
        %268 = vadd.xlane.f32.xlu0 %v267
        %v269 = vpop.xlane.xlu0 %268
        %v270 = vsel %vm261, %v258, 0.0
        %v271 = vadd.f32 %v257, %v270
        %272 = vadd.xlane.f32.xlu0 %v271
        %v273 = vpop.xlane.xlu0 %272
        %v274 = vsel %vm261, %v260, 0.0
        %v275 = vadd.f32 %v259, %v274
        %276 = vadd.xlane.f32.xlu0 %v275
        %v277 = vpop.xlane.xlu0 %276
        %v278 = vadd.f32 %v265, %v273
        %v279 = vadd.f32 %v269, %v277
        %v280 = vmul.f32 %v278, 0.0025510204
        %v281 = vmul.f32 %v279, 0.0025510204
        %v282 = vsub.f32 %v253, %v280
        %v283 = vsub.f32 %v254, %v280
        %v284 = vsub.f32 %v255, %v281
        %v285 = vsub.f32 %v256, %v281
        %v286 = vsub.f32 %v257, %v280
        %v287 = vsub.f32 %v258, %v280
        %v288 = vsub.f32 %v259, %v281
        %v289 = vsub.f32 %v260, %v281
        %v290 = vmul.f32 %v282, %v282
        %v291 = vmul.f32 %v283, %v283
        %v292 = vmul.f32 %v284, %v284
        %v293 = vmul.f32 %v285, %v285
        %v294 = vmul.f32 %v286, %v286
        %v295 = vmul.f32 %v287, %v287
        %v296 = vmul.f32 %v288, %v288
        %v297 = vmul.f32 %v289, %v289
        %v298 = vsel %vm261, %v291, 0.0
        %v299 = vadd.f32 %v290, %v298
        %300 = vadd.xlane.f32.xlu0 %v299
        %v301 = vpop.xlane.xlu0 %300
        %v302 = vsel %vm261, %v293, 0.0
        %v303 = vadd.f32 %v292, %v302
        %304 = vadd.xlane.f32.xlu0 %v303
        %v305 = vpop.xlane.xlu0 %304
        %v306 = vsel %vm261, %v295, 0.0
        %v307 = vadd.f32 %v294, %v306
        %308 = vadd.xlane.f32.xlu0 %v307
        %v309 = vpop.xlane.xlu0 %308
        %v310 = vsel %vm261, %v297, 0.0
        %v311 = vadd.f32 %v296, %v310
        %312 = vadd.xlane.f32.xlu0 %v311
        %v313 = vpop.xlane.xlu0 %312
        %v314 = vadd.f32 %v301, %v309
        %v315 = vadd.f32 %v305, %v313
        %v316 = vmul.f32 %v314, 0.0025510204
        %v317 = vmul.f32 %v315, 0.0025510204
        %v318 = vadd.f32 %v316, 0.001
        %v319 = vadd.f32 %v317, 0.001
        %v320 = vrsqrt.pop %v318
        %v321 = vrsqrt.pop %v319
        %v322 = vld [vmem:[%s244] sm:$0xff]
        %v323 = vld [vmem:[%s244 + $0x8] sm:$0xff]
        %v324 = vmul.f32 %v322, %v320
        %v325 = vmul.f32 %v323, %v321
        %v326 = vmul.f32 %v280, %v324
        %v327 = vmul.f32 %v281, %v325
        %330 = vrot.lane.b32.xlu0 %v326, 1
        %v331 = vpop.permute.xlu0 %330
        %332 = vrot.lane.b32.xlu0 %v327, 1
        %v333 = vpop.permute.xlu0 %332
        %v336 = vsub.f32 %v322, %v331
        %v337 = vsub.f32 %v323, %v333
        %339 = vset.pattern.permute.xlu0 0
        %340 = vperm.xlu0 %339, %v324
        %v341 = vpop.permute.xlu0 %340
        %344 = vset.pattern.permute.xlu0 0
        %345 = vperm.xlu0 %344, %v325
        %v346 = vpop.permute.xlu0 %345
        %v348 = vmul.f32 %v253, %v341
        %v349 = vmul.f32 %v254, %v341
        %v350 = vmul.f32 %v255, %v346
        %v351 = vmul.f32 %v256, %v346
        %v352 = vmul.f32 %v257, %v341
        %v353 = vmul.f32 %v258, %v341
        %v354 = vmul.f32 %v259, %v346
        %v355 = vmul.f32 %v260, %v346
        %357 = vset.pattern.permute.xlu0 1
        %358 = vperm.xlu0 %357, %v336
        %v359 = vpop.permute.xlu0 %358
        %362 = vset.pattern.permute.xlu0 1
        %363 = vperm.xlu0 %362, %v337
        %v364 = vpop.permute.xlu0 %363
        %v366 = vadd.f32 %v348, %v359
        %v367 = vadd.f32 %v349, %v359
        %v368 = vadd.f32 %v350, %v364
        %v369 = vadd.f32 %v351, %v364
        %v370 = vadd.f32 %v352, %v359
        %v371 = vadd.f32 %v353, %v359
        %v372 = vadd.f32 %v354, %v364
        %v373 = vadd.f32 %v355, %v364
        %374 = vst [vmem:[%s231] sm:$0xff] %v366
        %375 = vst.msk [vmem:[%s231 + $0x8] sm:$0xff] %vm261, %v367
        %376 = vst [vmem:[%s231 + $0x10] sm:$0xff] %v368
        %377 = vst.msk [vmem:[%s231 + $0x18] sm:$0xff] %vm261, %v369
        %378 = vst [vmem:[%s231 + $0x20] sm:$0xff] %v370
        %379 = vst.msk [vmem:[%s231 + $0x28] sm:$0xff] %vm261, %v371
        %380 = vst [vmem:[%s231 + $0x30] sm:$0xff] %v372
        %381 = vst.msk [vmem:[%s231 + $0x38] sm:$0xff] %vm261, %v373
        %vm382 = vcmask 7168
        %383 = vst.msk [vmem:[%s251] sm:$0xff] %vm382, %v280
        %384 = vst.msk [vmem:[%s251 + $0x8] sm:$0xff] %vm382, %v281
        %vm385 = vcmask 15368
        %386 = vst.msk [vmem:[%s251] sm:$0xff] %vm385, %v316
        %387 = vst.msk [vmem:[%s251 + $0x8] sm:$0xff] %vm385, %v317
        %s388 = sand.u32 %s81, 1
        %s389 = scalar_lea.sflag [#allocation4], %s388
        %s390 = sand.u32 %s81, 1
        %s391 = smul.addr %s390, 64
        %s392 = scalar_lea.vmem [#allocation5], %s391
        %s393 = smul.u32 2, %s21
        %p394 = scmp.lt.s32.totalorder %s393, 3
        %s395 = scalar_select %p394, %s393, 3
        %s396 = smul.addr %s395, 8
        %s397 = scalar_lea.vmem %s3, %s396
        // Predicated region
        $region33: #{tpu_custom_call.1} parent=27 // pred_check
          %p398 = pneg %p91
        $region34: #{tpu_custom_call.1} parent=27 // pred_check_branch
          %400 = sbr.rel (%p398) target = $region36
        $region35: #{tpu_custom_call.1} parent=27 // pred_region
          #allocation9 [shape = 'u32[6]{0}', space=smem, size = 0x18, scoped, tag = 'DMA stride descriptor']
          %s401 = smul.u32 2, %s21
          %s403 = ssub.s32 1024, 1024
          %404 = vsyncadd %s389, %s403
          %s405 = smul.addr %s401, 2
          %s406 = smul.addr %s405, 128
          %s407 = scalar_lea.hbm %s2, %s406
          %s409 = sshll.u32 1, 14
          %s410 = sxor.u32 4294967295, %s409
          %s413 = sshll.u32 7, 18
          %s414 = sxor.u32 4294967295, %s413
          %s415 = sand.u32 0, %s414
          %s417 = sor.u32 %s415, 0
          %s419 = sshll.u32 3, 24
          %s420 = sxor.u32 4294967295, %s419
          %s421 = sand.u32 %s417, %s420
          %s423 = sor.u32 %s421, 0
          %s424 = sshll.u32 %s392, 4
          %s425 = int_to_ptr.vmem [resolvable:$true] %s424
          %431 = sst [smem:[#allocation9]] 512
          %s432 = scalar_lea.smem [#allocation9], 1
          %433 = sst [smem:[%s432]] 1024
          %s434 = scalar_lea.smem [#allocation9], 2
          %435 = sst [smem:[%s434]] 2
          %s436 = scalar_lea.smem [#allocation9], 3
          %437 = sst [smem:[%s436]] 256
          %s438 = scalar_lea.smem [#allocation9], 4
          %439 = sst [smem:[%s438]] 256
          %s440 = scalar_lea.smem [#allocation9], 5
          %441 = sst [smem:[%s440]] 16
          %443 = dma.general %s425, 1024, %s407, %s389, [#allocation8], [#allocation9], %s423, 0
        $region36: #{tpu_custom_call.1} parent=27 // pred_fallthru
          _
        // Predicated region
        $region37: #{tpu_custom_call.1} parent=27 // pred_check
          %p444 = pneg %p117
        $region38: #{tpu_custom_call.1} parent=27 // pred_check_branch
          %446 = sbr.rel (%p444) target = $region40
        $region39: #{tpu_custom_call.1} parent=27 // pred_region
          %s447 = smul.u32 2, %s21
        $region40: #{tpu_custom_call.1} parent=27 // pred_fallthru
          _
      $region28: #{tpu_custom_call.1} parent=5 // pred_fallthru
        _
      %p448 = scmp.le.s32.totalorder 2, %s16
      // Predicated region
      $region41: #{tpu_custom_call.1} parent=5 // pred_check
        %p449 = pneg %p448
      $region42: #{tpu_custom_call.1} parent=5 // pred_check_branch
        %451 = sbr.rel (%p449) target = $region44
      $region43: #{tpu_custom_call.1} parent=5 // pred_region
        %s452 = ssub.s32 %s16, 2
        // Predicated region
        $region45: #{tpu_custom_call.1} parent=43 // pred_check
          %p453 = pneg %p97
        $region46: #{tpu_custom_call.1} parent=43 // pred_check_branch
          %455 = sbr.rel (%p453) target = $region48
        $region47: #{tpu_custom_call.1} parent=43 // pred_region
          %s456 = sand.u32 %s82, 1
          %s457 = scalar_lea.sflag [#allocation4], %s456
          %s458 = sand.u32 %s82, 1
          %s459 = smul.addr %s458, 64
          %s460 = scalar_lea.vmem [#allocation5], %s459
          %461 = dma.done %s457, 1024
        $region48: #{tpu_custom_call.1} parent=43 // pred_fallthru
          _
        // Predicated region
        $region49: #{tpu_custom_call.1} parent=43 // pred_check
          %p462 = pneg %p123
        $region50: #{tpu_custom_call.1} parent=43 // pred_check_branch
          %464 = sbr.rel (%p462) target = $region52
        $region51: #{tpu_custom_call.1} parent=43 // pred_region
          %s465 = smul.u32 2, %s22
          %p466 = scmp.lt.s32.totalorder %s465, 3
          %s467 = scalar_select %p466, %s465, 3
          %s468 = smul.addr %s467, 8
          %s469 = scalar_lea.vmem %s3, %s468
        $region52: #{tpu_custom_call.1} parent=43 // pred_fallthru
          _
      $region44: #{tpu_custom_call.1} parent=5 // pred_fallthru
        _
    $region6: #{tpu_custom_call.1} parent=1 // loop_footer
      %s20 = sadd.s32 1, %s16
    $region7: #{tpu_custom_call.1} parent=1 // loop_footer_branch
      %15 = sbr.rel target = $region3
    $region8: #{tpu_custom_call.1} parent=1 // loop_exit
      _
    %470 = vsyncpa [#allocation3], 1
    %s471 = scalar_lea.sflag [#allocation3], 1
    %472 = vsyncpa %s471, 1
    %473 = vsyncpa [#allocation4], 1
    %s474 = scalar_lea.sflag [#allocation4], 1
    %475 = vsyncpa %s474, 1

</llo_original>
